<compile_context>
chip_gen: v6e
topology: v6e:2x2x1
jax: 0.10.0
libtpu: 0.0.40
codegen_flags: <defaults>
</compile_context>

<pallas_src>
import jax
import jax.numpy as jnp
from jax import lax
from jax.experimental import pallas as pl
from jax.experimental.pallas import tpu as pltpu


# ------------------------------ Pallas kernel ------------------------------ #
def _cnn_fused_kernel(p_ref, w1_ref, w2_ref, wfc_ref, o_ref, h2_ref, hf_ref):
    # p_ref  : (16*Bc, 82)  patch rows = q*Bc + n  (q = pooled 4x4 position,
    #          n = image within block); cols = (ai*3+aj)*9 + (ki*3+kj), col 81 = 1
    # w1_ref : (82, 91)   kron(w1^T, I9) + bias row 81 + ones-passthrough col 90
    # w2_ref : (91, 21)   conv2 weight^T + bias row 90 + ones-passthrough col 20
    # wfc_ref: (336, 128) fc weight, rows = q*21 + c2 (bias at row 20), cols padded
    # o_ref  : (Bc, 128)
    # h2_ref : (16*Bc, 21) VMEM scratch ; hf_ref : (Bc, 336) VMEM scratch
    bc = o_ref.shape[0]

    # conv1 + ReLU + pool1 (only the surviving positions; bias folded in)
    h1 = jnp.maximum(
        jnp.dot(p_ref[...], w1_ref[...], preferred_element_type=jnp.float32), 0.0)
    # conv2 + ReLU + pool2
    h2_ref[...] = jnp.maximum(
        jnp.dot(h1, w2_ref[...], preferred_element_type=jnp.float32), 0.0)
    # flatten (16*Bc, 21) -> (Bc, 336): hf[n, q*21 + c] = h2[q*Bc + n, c]
    for q in range(16):
        hf_ref[:, 21 * q:21 * (q + 1)] = h2_ref[q * bc:(q + 1) * bc, :]
    # fc + ReLU (bias folded via the ones feature), 128-lane dense output
    o_ref[...] = jnp.maximum(
        jnp.dot(hf_ref[...], wfc_ref[...], preferred_element_type=jnp.float32), 0.0)


# ------------------------------- JAX glue ---------------------------------- #
def _extract_patches(x, block_n):
    """x: (Npad, 1, 128, 128) -> (Npad*16, 82) f32 patches (+ ones column).

    Row order: blk*(16*block_n) + (qh*4+qw)*block_n + n_in_block.
    Col order: (ai*3+aj)*9 + (ki*3+kj); col 81 == 1.
    patch value = x[n, 0, 36*qh + 6*ki + ai, 36*qw + 6*kj + aj] — exactly the
    input pixels feeding the pooled 4x4 conv2 output grid.
    """
    n_total = x.shape[0]
    assert x.shape[1:] == (1, 128, 128) and n_total % block_n == 0, x.shape
    nb = n_total // block_n
    x4 = x[:, 0, :, :].astype(jnp.float32)                        # (N,128,128)
    xp = jnp.pad(x4, ((0, 0), (0, 16), (0, 16)))                  # (N,144,144)
    xb = xp.reshape(n_total, 4, 36, 4, 36)[:, :, :18, :, :18]     # (N,4,18,4,18)
    xb = xb.reshape(n_total, 4, 3, 6, 4, 3, 6)[:, :, :, :3, :, :, :3]
    #                       axes: (n, qh, ki, ai, qw, kj, aj)
    xb = xb.reshape(nb, block_n, 4, 3, 3, 4, 3, 3)
    xb = xb.transpose(0, 2, 5, 1, 4, 7, 3, 6)   # (blk, qh, qw, n_in, ai, aj, ki, kj)
    patches = xb.reshape(n_total * 16, 81)
    ones = jnp.ones((n_total * 16, 1), jnp.float32)
    return jnp.concatenate([patches, ones], axis=1)               # (N*16, 82)


def _prepare_params(params):
    """One-time (tiny) repack of PyTorch-layout weights; biases folded in."""
    f32 = jnp.float32
    # conv1: kron-expanded, transposed; bias as an extra input row.
    w1f = params["w1"].reshape(10, 9).astype(f32)                 # [c1, ai*3+aj]
    w1T = jnp.kron(w1f.T, jnp.eye(9, dtype=f32))                  # (81, 90)
    w1_aug = jnp.concatenate([
        jnp.concatenate([w1T, jnp.zeros((81, 1), f32)], axis=1),
        jnp.concatenate([jnp.repeat(params["b1"].astype(f32), 9),
                         jnp.ones((1,), f32)])[None, :],
    ], axis=0)                                                    # (82, 91)

    # conv2: transposed flattened weight; bias row; ones-passthrough column.
    w2f = params["w2"].reshape(20, 90).astype(f32)                # [c2, c1*9+k]
    w2_aug = jnp.concatenate([
        jnp.concatenate([w2f.T, jnp.zeros((90, 1), f32)], axis=1),
        jnp.concatenate([params["b2"].astype(f32), jnp.ones((1,), f32)])[None, :],
    ], axis=0)                                                    # (91, 21)

    # fc: rows reordered to q*21 + c2 (matching the in-kernel flatten), bias at
    # row (q=0, c=20), output columns padded 100 -> 128 for lane-dense stores.
    wfc3 = params["wfc"].reshape(20, 16, 100).astype(f32)         # [c2, q, o]
    wq = jnp.transpose(wfc3, (1, 0, 2))                           # [q, c2, o]
    bias_rows = jnp.zeros((16, 1, 100), f32).at[0, 0, :].set(
        params["bfc"].astype(f32))
    wfc_r = jnp.concatenate([wq, bias_rows], axis=1).reshape(336, 100)
    wfc_r = jnp.pad(wfc_r, ((0, 0), (0, 28)))                     # (336, 128)
    return w1_aug, w2_aug, wfc_r


def cnn_forward(x, params, block_n=None):
    n = x.shape[0]
    bc = block_n if block_n is not None else (n if n <= 8 else 8)
    nb = pl.cdiv(n, bc)
    n_pad = nb * bc
    if n_pad != n:
        x = jnp.pad(x, ((0, n_pad - n), (0, 0), (0, 0), (0, 0)))
    patches = _extract_patches(x, bc)                             # (n_pad*16, 82)
    w1a, w2a, wfca = _prepare_params(params)

    out = pl.pallas_call(
        _cnn_fused_kernel,
        out_shape=jax.ShapeDtypeStruct((n_pad, 128), jnp.float32),
        grid=(nb,),
        in_specs=[
            pl.BlockSpec((16 * bc, 82), lambda i: (i, 0)),
            pl.BlockSpec((82, 91), lambda i: (0, 0)),
            pl.BlockSpec((91, 21), lambda i: (0, 0)),
            pl.BlockSpec((336, 128), lambda i: (0, 0)),
        ],
        out_specs=pl.BlockSpec((bc, 128), lambda i: (i, 0)),
        scratch_shapes=[
            pltpu.VMEM((16 * bc, 21), jnp.float32),
            pltpu.VMEM((bc, 336), jnp.float32),
        ],
        compiler_params=pltpu.CompilerParams(
            dimension_semantics=(("arbitrary",) if nb == 1 else ("parallel",))),
    )(patches, w1a, w2a, wfca)
    return out[:n, :100]


# -------------------------- plain-JAX reference ----------------------------- #
def cnn_reference(x, params):
    hp = lax.Precision.HIGHEST
    y = lax.conv_general_dilated(x, params["w1"], (2, 2), "VALID",
                                 dimension_numbers=("NCHW", "OIHW", "NCHW"),
                                 precision=hp)
    y = jnp.maximum(y + params["b1"][None, :, None, None], 0.0)
    y = y[:, :, ::3, ::3]                                   # maxpool(k=1, s=3)
    y = lax.conv_general_dilated(y, params["w2"], (2, 2), "VALID",
                                 dimension_numbers=("NCHW", "OIHW", "NCHW"),
                                 precision=hp)
    y = jnp.maximum(y + params["b2"][None, :, None, None], 0.0)
    y = y[:, :, ::3, ::3]
    y = y.reshape(y.shape[0], -1)                           # (N, 320), (C,H,W) order
    y = jnp.maximum(jnp.dot(y, params["wfc"], precision=hp) + params["bfc"], 0.0)
    return y


# --------------------------------- params ----------------------------------- #
def init_params(key):
    k1, k2, k3, k4, k5, k6 = jax.random.split(key, 6)

    def u(k, shape, fan_in):
        bound = 1.0 / jnp.sqrt(fan_in)
        return jax.random.uniform(k, shape, jnp.float32, -bound, bound)

    return {
        "w1": u(k1, (10, 1, 3, 3), 1 * 3 * 3),
        "b1": u(k2, (10,), 1 * 3 * 3),
        "w2": u(k3, (20, 10, 3, 3), 10 * 3 * 3),
        "b2": u(k4, (20,), 10 * 3 * 3),
        "wfc": u(k5, (4 * 4 * 20, 100), 4 * 4 * 20),   # (in, out) == torch W.T
        "bfc": u(k6, (100,), 4 * 4 * 20),
    }


if __name__ == "__main__":
    key = jax.random.PRNGKey(0)
    pkey, xkey = jax.random.split(key)
    params = init_params(pkey)
    # The fc layer (4*4*20 features) implies a 128x128 single-channel input.
    x = jax.random.normal(xkey, (2, 1, 128, 128), jnp.float32)

    out = jax.block_until_ready(jax.jit(cnn_forward)(x, params))
    assert out.shape == (2, 100), out.shape
    assert bool(jnp.all(out >= 0.0))

    ref = jax.block_until_ready(jax.jit(cnn_reference)(x, params))
    assert bool(jnp.allclose(out, ref, atol=1e-3, rtol=1e-3)), \
        float(jnp.max(jnp.abs(out - ref)))
    print("KERNEL_OK")
</pallas_src>

<mosaic_0001>
module attributes {stable_mosaic.version = 11 : i64} {
  func.func @_cnn_fused_kernel(%arg0: i32, %arg1: memref<32x82xf32, #tpu.memory_space<vmem>>, %arg2: memref<82x91xf32, #tpu.memory_space<vmem>>, %arg3: memref<91x21xf32, #tpu.memory_space<vmem>>, %arg4: memref<336x128xf32, #tpu.memory_space<vmem>>, %arg5: memref<2x128xf32, #tpu.memory_space<vmem>>, %arg6: memref<32x21xf32, #tpu.memory_space<vmem>>, %arg7: memref<2x336xf32, #tpu.memory_space<vmem>>) attributes {dimension_semantics = [#tpu.dimension_semantics<arbitrary>], iteration_bounds = array<i64: 1>, scalar_prefetch = 0 : i64, scratch_operands = 2 : i64, tpu.core_type = #tpu.core_type<tc>, window_params = [{transform_indices = @transform_0, window_bounds = array<i64: 32, 82>}, {pipeline_mode = #tpu.pipeline_mode<synchronous>, transform_indices = @transform_1, window_bounds = array<i64: 82, 91>}, {pipeline_mode = #tpu.pipeline_mode<synchronous>, transform_indices = @transform_2, window_bounds = array<i64: 91, 21>}, {pipeline_mode = #tpu.pipeline_mode<synchronous>, transform_indices = @transform_3, window_bounds = array<i64: 336, 128>}, {transform_indices = @transform_4, window_bounds = array<i64: 2, 128>}]} {
    %c0 = arith.constant 0 : index
    %c0_0 = arith.constant 0 : index
    %0 = vector.load %arg1[%c0, %c0_0] : memref<32x82xf32, #tpu.memory_space<vmem>>, vector<32x82xf32>
    %c0_1 = arith.constant 0 : index
    %c0_2 = arith.constant 0 : index
    %1 = vector.load %arg2[%c0_1, %c0_2] : memref<82x91xf32, #tpu.memory_space<vmem>>, vector<82x91xf32>
    %cst = arith.constant dense<0.000000e+00> : vector<32x91xf32>
    %2 = tpu.matmul %0, %1, %cst {dimension_numbers = #tpu.dot_dimension_numbers<[1], [0], [0], [1], [0, 0, 1, 1], [], []>} : vector<32x82xf32>, vector<82x91xf32>, vector<32x91xf32> -> vector<32x91xf32>
    %cst_3 = arith.constant 0.000000e+00 : f32
    %3 = vector.broadcast %cst_3 : f32 to vector<32x91xf32>
    %4 = arith.maximumf %2, %3 : vector<32x91xf32>
    %c0_4 = arith.constant 0 : index
    %c0_5 = arith.constant 0 : index
    %5 = vector.load %arg3[%c0_4, %c0_5] : memref<91x21xf32, #tpu.memory_space<vmem>>, vector<91x21xf32>
    %cst_6 = arith.constant dense<0.000000e+00> : vector<32x21xf32>
    %6 = tpu.matmul %4, %5, %cst_6 {dimension_numbers = #tpu.dot_dimension_numbers<[1], [0], [0], [1], [0, 0, 1, 1], [], []>} : vector<32x91xf32>, vector<91x21xf32>, vector<32x21xf32> -> vector<32x21xf32>
    %cst_7 = arith.constant 0.000000e+00 : f32
    %7 = vector.broadcast %cst_7 : f32 to vector<32x21xf32>
    %8 = arith.maximumf %6, %7 : vector<32x21xf32>
    %c0_8 = arith.constant 0 : index
    %c0_9 = arith.constant 0 : index
    %9 = vector.load %arg6[%c0_8, %c0_9] : memref<32x21xf32, #tpu.memory_space<vmem>>, vector<32x21xf32>
    tpu.vector_store %arg6[%c0_8, %c0_9], %8 {strides = array<i32>} : memref<32x21xf32, #tpu.memory_space<vmem>>, vector<32x21xf32>,
    %c0_10 = arith.constant 0 : index
    %c0_11 = arith.constant 0 : index
    %10 = vector.load %arg6[%c0_10, %c0_11] : memref<32x21xf32, #tpu.memory_space<vmem>>, vector<2x21xf32>
    %c0_12 = arith.constant 0 : index
    %c0_13 = arith.constant 0 : index
    %11 = vector.load %arg7[%c0_12, %c0_13] : memref<2x336xf32, #tpu.memory_space<vmem>>, vector<2x21xf32>
    tpu.vector_store %arg7[%c0_12, %c0_13], %10 {strides = array<i32>} : memref<2x336xf32, #tpu.memory_space<vmem>>, vector<2x21xf32>,
    %c2 = arith.constant 2 : index
    %c0_14 = arith.constant 0 : index
    %12 = vector.load %arg6[%c2, %c0_14] : memref<32x21xf32, #tpu.memory_space<vmem>>, vector<2x21xf32>
    %c0_15 = arith.constant 0 : index
    %c21 = arith.constant 21 : index
    %13 = vector.load %arg7[%c0_15, %c21] : memref<2x336xf32, #tpu.memory_space<vmem>>, vector<2x21xf32>
    tpu.vector_store %arg7[%c0_15, %c21], %12 {strides = array<i32>} : memref<2x336xf32, #tpu.memory_space<vmem>>, vector<2x21xf32>,
    %c4 = arith.constant 4 : index
    %c0_16 = arith.constant 0 : index
    %14 = vector.load %arg6[%c4, %c0_16] : memref<32x21xf32, #tpu.memory_space<vmem>>, vector<2x21xf32>
    %c0_17 = arith.constant 0 : index
    %c42 = arith.constant 42 : index
    %15 = vector.load %arg7[%c0_17, %c42] : memref<2x336xf32, #tpu.memory_space<vmem>>, vector<2x21xf32>
    tpu.vector_store %arg7[%c0_17, %c42], %14 {strides = array<i32>} : memref<2x336xf32, #tpu.memory_space<vmem>>, vector<2x21xf32>,
    %c6 = arith.constant 6 : index
    %c0_18 = arith.constant 0 : index
    %16 = vector.load %arg6[%c6, %c0_18] : memref<32x21xf32, #tpu.memory_space<vmem>>, vector<2x21xf32>
    %c0_19 = arith.constant 0 : index
    %c63 = arith.constant 63 : index
    %17 = vector.load %arg7[%c0_19, %c63] : memref<2x336xf32, #tpu.memory_space<vmem>>, vector<2x21xf32>
    tpu.vector_store %arg7[%c0_19, %c63], %16 {strides = array<i32>} : memref<2x336xf32, #tpu.memory_space<vmem>>, vector<2x21xf32>,
    %c8 = arith.constant 8 : index
    %c0_20 = arith.constant 0 : index
    %18 = vector.load %arg6[%c8, %c0_20] : memref<32x21xf32, #tpu.memory_space<vmem>>, vector<2x21xf32>
    %c0_21 = arith.constant 0 : index
    %c84 = arith.constant 84 : index
    %19 = vector.load %arg7[%c0_21, %c84] : memref<2x336xf32, #tpu.memory_space<vmem>>, vector<2x21xf32>
    tpu.vector_store %arg7[%c0_21, %c84], %18 {strides = array<i32>} : memref<2x336xf32, #tpu.memory_space<vmem>>, vector<2x21xf32>,
    %c10 = arith.constant 10 : index
    %c0_22 = arith.constant 0 : index
    %20 = vector.load %arg6[%c10, %c0_22] : memref<32x21xf32, #tpu.memory_space<vmem>>, vector<2x21xf32>
    %c0_23 = arith.constant 0 : index
    %c105 = arith.constant 105 : index
    %21 = vector.load %arg7[%c0_23, %c105] : memref<2x336xf32, #tpu.memory_space<vmem>>, vector<2x21xf32>
    tpu.vector_store %arg7[%c0_23, %c105], %20 {strides = array<i32>} : memref<2x336xf32, #tpu.memory_space<vmem>>, vector<2x21xf32>,
    %c12 = arith.constant 12 : index
    %c0_24 = arith.constant 0 : index
    %22 = vector.load %arg6[%c12, %c0_24] : memref<32x21xf32, #tpu.memory_space<vmem>>, vector<2x21xf32>
    %c0_25 = arith.constant 0 : index
    %c126 = arith.constant 126 : index
    %23 = vector.load %arg7[%c0_25, %c126] : memref<2x336xf32, #tpu.memory_space<vmem>>, vector<2x21xf32>
    tpu.vector_store %arg7[%c0_25, %c126], %22 {strides = array<i32>} : memref<2x336xf32, #tpu.memory_space<vmem>>, vector<2x21xf32>,
    %c14 = arith.constant 14 : index
    %c0_26 = arith.constant 0 : index
    %24 = vector.load %arg6[%c14, %c0_26] : memref<32x21xf32, #tpu.memory_space<vmem>>, vector<2x21xf32>
    %c0_27 = arith.constant 0 : index
    %c147 = arith.constant 147 : index
    %25 = vector.load %arg7[%c0_27, %c147] : memref<2x336xf32, #tpu.memory_space<vmem>>, vector<2x21xf32>
    tpu.vector_store %arg7[%c0_27, %c147], %24 {strides = array<i32>} : memref<2x336xf32, #tpu.memory_space<vmem>>, vector<2x21xf32>,
    %c16 = arith.constant 16 : index
    %c0_28 = arith.constant 0 : index
    %26 = vector.load %arg6[%c16, %c0_28] : memref<32x21xf32, #tpu.memory_space<vmem>>, vector<2x21xf32>
    %c0_29 = arith.constant 0 : index
    %c168 = arith.constant 168 : index
    %27 = vector.load %arg7[%c0_29, %c168] : memref<2x336xf32, #tpu.memory_space<vmem>>, vector<2x21xf32>
    tpu.vector_store %arg7[%c0_29, %c168], %26 {strides = array<i32>} : memref<2x336xf32, #tpu.memory_space<vmem>>, vector<2x21xf32>,
    %c18 = arith.constant 18 : index
    %c0_30 = arith.constant 0 : index
    %28 = vector.load %arg6[%c18, %c0_30] : memref<32x21xf32, #tpu.memory_space<vmem>>, vector<2x21xf32>
    %c0_31 = arith.constant 0 : index
    %c189 = arith.constant 189 : index
    %29 = vector.load %arg7[%c0_31, %c189] : memref<2x336xf32, #tpu.memory_space<vmem>>, vector<2x21xf32>
    tpu.vector_store %arg7[%c0_31, %c189], %28 {strides = array<i32>} : memref<2x336xf32, #tpu.memory_space<vmem>>, vector<2x21xf32>,
    %c20 = arith.constant 20 : index
    %c0_32 = arith.constant 0 : index
    %30 = vector.load %arg6[%c20, %c0_32] : memref<32x21xf32, #tpu.memory_space<vmem>>, vector<2x21xf32>
    %c0_33 = arith.constant 0 : index
    %c210 = arith.constant 210 : index
    %31 = vector.load %arg7[%c0_33, %c210] : memref<2x336xf32, #tpu.memory_space<vmem>>, vector<2x21xf32>
    tpu.vector_store %arg7[%c0_33, %c210], %30 {strides = array<i32>} : memref<2x336xf32, #tpu.memory_space<vmem>>, vector<2x21xf32>,
    %c22 = arith.constant 22 : index
    %c0_34 = arith.constant 0 : index
    %32 = vector.load %arg6[%c22, %c0_34] : memref<32x21xf32, #tpu.memory_space<vmem>>, vector<2x21xf32>
    %c0_35 = arith.constant 0 : index
    %c231 = arith.constant 231 : index
    %33 = vector.load %arg7[%c0_35, %c231] : memref<2x336xf32, #tpu.memory_space<vmem>>, vector<2x21xf32>
    tpu.vector_store %arg7[%c0_35, %c231], %32 {strides = array<i32>} : memref<2x336xf32, #tpu.memory_space<vmem>>, vector<2x21xf32>,
    %c24 = arith.constant 24 : index
    %c0_36 = arith.constant 0 : index
    %34 = vector.load %arg6[%c24, %c0_36] : memref<32x21xf32, #tpu.memory_space<vmem>>, vector<2x21xf32>
    %c0_37 = arith.constant 0 : index
    %c252 = arith.constant 252 : index
    %35 = vector.load %arg7[%c0_37, %c252] : memref<2x336xf32, #tpu.memory_space<vmem>>, vector<2x21xf32>
    tpu.vector_store %arg7[%c0_37, %c252], %34 {strides = array<i32>} : memref<2x336xf32, #tpu.memory_space<vmem>>, vector<2x21xf32>,
    %c26 = arith.constant 26 : index
    %c0_38 = arith.constant 0 : index
    %36 = vector.load %arg6[%c26, %c0_38] : memref<32x21xf32, #tpu.memory_space<vmem>>, vector<2x21xf32>
    %c0_39 = arith.constant 0 : index
    %c273 = arith.constant 273 : index
    %37 = vector.load %arg7[%c0_39, %c273] : memref<2x336xf32, #tpu.memory_space<vmem>>, vector<2x21xf32>
    tpu.vector_store %arg7[%c0_39, %c273], %36 {strides = array<i32>} : memref<2x336xf32, #tpu.memory_space<vmem>>, vector<2x21xf32>,
    %c28 = arith.constant 28 : index
    %c0_40 = arith.constant 0 : index
    %38 = vector.load %arg6[%c28, %c0_40] : memref<32x21xf32, #tpu.memory_space<vmem>>, vector<2x21xf32>
    %c0_41 = arith.constant 0 : index
    %c294 = arith.constant 294 : index
    %39 = vector.load %arg7[%c0_41, %c294] : memref<2x336xf32, #tpu.memory_space<vmem>>, vector<2x21xf32>
    tpu.vector_store %arg7[%c0_41, %c294], %38 {strides = array<i32>} : memref<2x336xf32, #tpu.memory_space<vmem>>, vector<2x21xf32>,
    %c30 = arith.constant 30 : index
    %c0_42 = arith.constant 0 : index
    %40 = vector.load %arg6[%c30, %c0_42] : memref<32x21xf32, #tpu.memory_space<vmem>>, vector<2x21xf32>
    %c0_43 = arith.constant 0 : index
    %c315 = arith.constant 315 : index
    %41 = vector.load %arg7[%c0_43, %c315] : memref<2x336xf32, #tpu.memory_space<vmem>>, vector<2x21xf32>
    tpu.vector_store %arg7[%c0_43, %c315], %40 {strides = array<i32>} : memref<2x336xf32, #tpu.memory_space<vmem>>, vector<2x21xf32>,
    %c0_44 = arith.constant 0 : index
    %c0_45 = arith.constant 0 : index
    %42 = vector.load %arg7[%c0_44, %c0_45] : memref<2x336xf32, #tpu.memory_space<vmem>>, vector<2x336xf32>
    %c0_46 = arith.constant 0 : index
    %c0_47 = arith.constant 0 : index
    %43 = vector.load %arg4[%c0_46, %c0_47] : memref<336x128xf32, #tpu.memory_space<vmem>>, vector<336x128xf32>
    %cst_48 = arith.constant dense<0.000000e+00> : vector<2x128xf32>
    %44 = tpu.matmul %42, %43, %cst_48 {dimension_numbers = #tpu.dot_dimension_numbers<[1], [0], [0], [1], [0, 0, 1, 1], [], []>} : vector<2x336xf32>, vector<336x128xf32>, vector<2x128xf32> -> vector<2x128xf32>
    %cst_49 = arith.constant 0.000000e+00 : f32
    %45 = vector.broadcast %cst_49 : f32 to vector<2x128xf32>
    %46 = arith.maximumf %44, %45 : vector<2x128xf32>
    %c0_50 = arith.constant 0 : index
    %c0_51 = arith.constant 0 : index
    %47 = vector.load %arg5[%c0_50, %c0_51] : memref<2x128xf32, #tpu.memory_space<vmem>>, vector<2x128xf32>
    tpu.vector_store %arg5[%c0_50, %c0_51], %46 {strides = array<i32>} : memref<2x128xf32, #tpu.memory_space<vmem>>, vector<2x128xf32>,
    return
  }
  func.func @transform_0(%arg0: i32) -> (i32, i32) {
    %c0_i32 = arith.constant 0 : i32
    %c0_i32_0 = arith.constant 0 : i32
    return %arg0, %c0_i32 : i32, i32
  }
  func.func @transform_1(%arg0: i32) -> (i32, i32) {
    %c0_i32 = arith.constant 0 : i32
    %c0_i32_0 = arith.constant 0 : i32
    %c0_i32_1 = arith.constant 0 : i32
    return %c0_i32, %c0_i32_0 : i32, i32
  }
  func.func @transform_2(%arg0: i32) -> (i32, i32) {
    %c0_i32 = arith.constant 0 : i32
    %c0_i32_0 = arith.constant 0 : i32
    %c0_i32_1 = arith.constant 0 : i32
    return %c0_i32, %c0_i32_0 : i32, i32
  }
  func.func @transform_3(%arg0: i32) -> (i32, i32) {
    %c0_i32 = arith.constant 0 : i32
    %c0_i32_0 = arith.constant 0 : i32
    %c0_i32_1 = arith.constant 0 : i32
    return %c0_i32, %c0_i32_0 : i32, i32
  }
  func.func @transform_4(%arg0: i32) -> (i32, i32) {
    %c0_i32 = arith.constant 0 : i32
    %c0_i32_0 = arith.constant 0 : i32
    return %arg0, %c0_i32 : i32, i32
  }
}

</mosaic_0001>

<llo_original>
// kernel: cnn_forward.1
$region0: #{cnn_forward.1}
  #allocation0 [shape = 'u32[]', space=smem, size = 0x4, offset = 0x4, fixed_abs, tag = 'smem constant byte address 0x4 - core index']
  #allocation1 [shape = 'u32[144,128]{1,0:T(1,128)}', space=vmem, size = 0x12000, scoped, tag = 'internal scratch']
  #allocation2 [shape = 'f32[32,21]{1,0:T(8,128)}', space=vmem, size = 0x4000, scoped, tag = 'scratch operand']
  #allocation3 [shape = 'f32[2,336]{1,0:T(2,128)}', space=vmem, size = 0xc00, scoped, tag = 'scratch operand']
  %s0 = inlined_call_operand.vmem [shape: f32[32,82], index: 0, kind: input, shape index: {}]
  %s1 = inlined_call_operand.vmem [shape: f32[82,91], index: 1, kind: input, shape index: {}]
  %s2 = inlined_call_operand.vmem [shape: f32[91,21], index: 2, kind: input, shape index: {}]
  %s3 = inlined_call_operand.vmem [shape: f32[336,128], index: 3, kind: input, shape index: {}]
  %s4 = inlined_call_operand.hbm [shape: f32[2,128], index: 4, kind: output, shape index: {}]
  %s5 = sld [smem:[#allocation0]]
  $region26: #{cnn_forward.1} parent=0
    _
  %s7 = ssub.s32 1, %s5
  %s8 = scalar_select 0, %s7, %s5
  $region1: #{cnn_forward.1} parent=0
    #allocation4 [shape = 'u8[1024]{0}', space=vmem, size = 0x400, scoped, tag = 'output window, operand 0, single buffered']
    #allocation5 [shape = 's32[1]{0}', space=sflag, size = 0x4, scoped, tag = 'scoped memory for cnn_forward.1']
    %9 = vsyncpa [#allocation5], 0
    // Predicated region
    $region2: #{cnn_forward.1} parent=1 // pred_check
      _
    $region3: #{cnn_forward.1} parent=1 // pred_check_branch
      %11 = sbr.rel (0) target = $region5
    $region4: #{cnn_forward.1} parent=1 // pred_region
      _
    $region5: #{cnn_forward.1} parent=1 // pred_fallthru
      _
    // Predicated region
    $region6: #{cnn_forward.1} parent=1 // pred_check
      _
    $region7: #{cnn_forward.1} parent=1 // pred_check_branch
      %13 = sbr.rel (0) target = $region9
    $region8: #{cnn_forward.1} parent=1 // pred_region
      _
    $region9: #{cnn_forward.1} parent=1 // pred_fallthru
      _
    // Predicated region
    $region10: #{cnn_forward.1} parent=1 // pred_check
      _
    $region11: #{cnn_forward.1} parent=1 // pred_check_branch
      %15 = sbr.rel (0) target = $region13
    $region12: #{cnn_forward.1} parent=1 // pred_region
      _
    $region13: #{cnn_forward.1} parent=1 // pred_fallthru
      _
    // Predicated region
    $region14: #{cnn_forward.1} parent=1 // pred_check
      _
    $region15: #{cnn_forward.1} parent=1 // pred_check_branch
      %17 = sbr.rel (0) target = $region17
    $region16: #{cnn_forward.1} parent=1 // pred_region
      _
    $region17: #{cnn_forward.1} parent=1 // pred_fallthru
      _
    %v18 = vld [vmem:[%s0] sm:$0xff]
    %v19 = vld [vmem:[%s0 + $0x8] sm:$0xff]
    %v20 = vld [vmem:[%s0 + $0x10] sm:$0xff]
    %v21 = vld [vmem:[%s0 + $0x18] sm:$0xff]
    %v22 = vld [vmem:[%s1] sm:$0xff]
    %v23 = vld [vmem:[%s1 + $0x8] sm:$0xff]
    %v24 = vld [vmem:[%s1 + $0x10] sm:$0xff]
    %v25 = vld [vmem:[%s1 + $0x18] sm:$0xff]
    %v26 = vld [vmem:[%s1 + $0x20] sm:$0xff]
    %v27 = vld [vmem:[%s1 + $0x28] sm:$0xff]
    %v28 = vld [vmem:[%s1 + $0x30] sm:$0xff]
    %v29 = vld [vmem:[%s1 + $0x38] sm:$0xff]
    %v30 = vld [vmem:[%s1 + $0x40] sm:$0xff]
    %v31 = vld [vmem:[%s1 + $0x48] sm:$0xff]
    %v32 = vld [vmem:[%s1 + $0x50] sm:$0x3]
    %vm33 = vcmask 670720
    %v35 = vsel %vm33, %v18, 0
    %v38 = vsel %vm33, %v19, 0
    %v41 = vsel %vm33, %v20, 0
    %v44 = vsel %vm33, %v21, 0
    %vm46 = vcmask 1041408
    %v48 = vsel %vm46, %v32, 0
    %50 = vmatprep.subr.mxu0 0.0
    %51 = vmatpush1.msra.mxu0 0.0
    %52 = vmatprep.subr.mxu0 0.0
    %53 = vmatpush1.msra.mxu0 0.0
    %54 = vmatprep.subr.mxu0 0.0
    %55 = vmatpush1.msra.mxu0 0.0
    %56 = vmatprep.subr.mxu0 0.0
    %57 = vmatpush1.msra.mxu0 0.0
    %58 = vmatprep.subr.mxu0 0.0
    %59 = vmatpush1.msra.mxu0 0.0
    %60 = vmatprep.subr.mxu0 0.0
    %61 = vmatpush1.msra.mxu0 %v48
    %62 = vmatprep.subr.mxu0 0.0
    %63 = vmatpush1.msra.mxu0 %v31
    %64 = vmatprep.subr.mxu0 0.0
    %65 = vmatpush1.msra.mxu0 %v30
    %66 = vmatprep.subr.mxu0 0.0
    %67 = vmatpush1.msra.mxu0 %v29
    %68 = vmatprep.subr.mxu0 0.0
    %69 = vmatpush1.msra.mxu0 %v28
    %70 = vmatprep.subr.mxu0 0.0
    %71 = vmatpush1.msra.mxu0 %v27
    %72 = vmatprep.subr.mxu0 0.0
    %73 = vmatpush1.msra.mxu0 %v26
    %74 = vmatprep.subr.mxu0 0.0
    %75 = vmatpush1.msra.mxu0 %v25
    %76 = vmatprep.subr.mxu0 0.0
    %77 = vmatpush1.msra.mxu0 %v24
    %78 = vmatprep.subr.mxu0 0.0
    %79 = vmatpush1.msra.mxu0 %v23
    %80 = vmatprep.subr.mxu0 0.0
    %81 = vmatpush1.msra.mxu0 %v22
    %82 = vmatprep.subr.mxu0 0.0
    %83 = vmatpush2.msra.mxu0 0.0
    %84 = vmatprep.subr.mxu0 0.0
    %85 = vmatpush2.msra.mxu0 0.0
    %86 = vmatprep.subr.mxu0 0.0
    %87 = vmatpush2.msra.mxu0 0.0
    %88 = vmatprep.subr.mxu0 0.0
    %89 = vmatpush2.msra.mxu0 0.0
    %90 = vmatprep.subr.mxu0 0.0
    %91 = vmatpush2.msra.mxu0 0.0
    %92 = vmatprep.subr.mxu0 0.0
    %93 = vmatpush2.msra.mxu0 0.0
    %94 = vmatprep.subr.mxu0 0.0
    %95 = vmatpush2.msra.mxu0 0.0
    %96 = vmatprep.subr.mxu0 0.0
    %97 = vmatpush2.msra.mxu0 0.0
    %98 = vmatprep.subr.mxu0 0.0
    %99 = vmatpush2.msra.mxu0 0.0
    %100 = vmatprep.subr.mxu0 0.0
    %101 = vmatpush2.msra.mxu0 0.0
    %102 = vmatprep.subr.mxu0 0.0
    %103 = vmatpush2.msra.mxu0 0.0
    %104 = vmatprep.subr.mxu0 0.0
    %105 = vmatpush2.msra.mxu0 0.0
    %106 = vmatprep.subr.mxu0 0.0
    %107 = vmatpush2.msra.mxu0 0.0
    %108 = vmatprep.subr.mxu0 0.0
    %109 = vmatpush2.msra.mxu0 0.0
    %110 = vmatprep.subr.mxu0 0.0
    %111 = vmatpush2.msra.mxu0 0.0
    %112 = vmatprep.subr.mxu0 0.0
    %113 = vmatpush2.msra.mxu0 0.0
    %114 = vmatprep.mubr.f32.mxu0 0.0
    %115 = vmatmul.mubr.f32.gmra.mxu0 %v35
    %v116 = vpop.f32.mrf.mxu0
    %v117 = vadd.f32 0.0, %v116
    %v118 = vpop.f32.mrf.mxu0
    %119 = vmatprep.mubr.f32.mxu0 0.0
    %120 = vmatmul.mubr.f32.gmra.mxu0 %v38
    %v121 = vpop.f32.mrf.mxu0
    %v122 = vadd.f32 0.0, %v121
    %v123 = vpop.f32.mrf.mxu0
    %124 = vmatprep.mubr.f32.mxu0 0.0
    %125 = vmatmul.mubr.f32.gmra.mxu0 %v41
    %v126 = vpop.f32.mrf.mxu0
    %v127 = vadd.f32 0.0, %v126
    %v128 = vpop.f32.mrf.mxu0
    %129 = vmatprep.mubr.f32.mxu0 0.0
    %130 = vmatmul.mubr.f32.gmra.mxu0 %v44
    %v131 = vpop.f32.mrf.mxu0
    %v132 = vadd.f32 0.0, %v131
    %v133 = vpop.f32.mrf.mxu0
    %134 = vdwg.mxu0
    %v135 = vmax.f32 %v117, 0.0
    %v136 = vmax.f32 %v122, 0.0
    %v137 = vmax.f32 %v127, 0.0
    %v138 = vmax.f32 %v132, 0.0
    %v139 = vld [vmem:[%s2] sm:$0xff]
    %v140 = vld [vmem:[%s2 + $0x8] sm:$0xff]
    %v141 = vld [vmem:[%s2 + $0x10] sm:$0xff]
    %v142 = vld [vmem:[%s2 + $0x18] sm:$0xff]
    %v143 = vld [vmem:[%s2 + $0x20] sm:$0xff]
    %v144 = vld [vmem:[%s2 + $0x28] sm:$0xff]
    %v145 = vld [vmem:[%s2 + $0x30] sm:$0xff]
    %v146 = vld [vmem:[%s2 + $0x38] sm:$0xff]
    %v147 = vld [vmem:[%s2 + $0x40] sm:$0xff]
    %v148 = vld [vmem:[%s2 + $0x48] sm:$0xff]
    %v149 = vld [vmem:[%s2 + $0x50] sm:$0xff]
    %v150 = vld [vmem:[%s2 + $0x58] sm:$0x7]
    %vm151 = vcmask 744448
    %v153 = vsel %vm151, %v135, 0
    %v156 = vsel %vm151, %v136, 0
    %v159 = vsel %vm151, %v137, 0
    %v162 = vsel %vm151, %v138, 0
    %vm164 = vcmask 1042432
    %v166 = vsel %vm164, %v150, 0
    %168 = vmatprep.subr.mxu0 0.0
    %169 = vmatpush1.msra.mxu0 0.0
    %170 = vmatprep.subr.mxu0 0.0
    %171 = vmatpush1.msra.mxu0 0.0
    %172 = vmatprep.subr.mxu0 0.0
    %173 = vmatpush1.msra.mxu0 0.0
    %174 = vmatprep.subr.mxu0 0.0
    %175 = vmatpush1.msra.mxu0 0.0
    %176 = vmatprep.subr.mxu0 0.0
    %177 = vmatpush1.msra.mxu0 %v166
    %178 = vmatprep.subr.mxu0 0.0
    %179 = vmatpush1.msra.mxu0 %v149
    %180 = vmatprep.subr.mxu0 0.0
    %181 = vmatpush1.msra.mxu0 %v148
    %182 = vmatprep.subr.mxu0 0.0
    %183 = vmatpush1.msra.mxu0 %v147
    %184 = vmatprep.subr.mxu0 0.0
    %185 = vmatpush1.msra.mxu0 %v146
    %186 = vmatprep.subr.mxu0 0.0
    %187 = vmatpush1.msra.mxu0 %v145
    %188 = vmatprep.subr.mxu0 0.0
    %189 = vmatpush1.msra.mxu0 %v144
    %190 = vmatprep.subr.mxu0 0.0
    %191 = vmatpush1.msra.mxu0 %v143
    %192 = vmatprep.subr.mxu0 0.0
    %193 = vmatpush1.msra.mxu0 %v142
    %194 = vmatprep.subr.mxu0 0.0
    %195 = vmatpush1.msra.mxu0 %v141
    %196 = vmatprep.subr.mxu0 0.0
    %197 = vmatpush1.msra.mxu0 %v140
    %198 = vmatprep.subr.mxu0 0.0
    %199 = vmatpush1.msra.mxu0 %v139
    %200 = vmatprep.subr.mxu0 0.0
    %201 = vmatpush2.msra.mxu0 0.0
    %202 = vmatprep.subr.mxu0 0.0
    %203 = vmatpush2.msra.mxu0 0.0
    %204 = vmatprep.subr.mxu0 0.0
    %205 = vmatpush2.msra.mxu0 0.0
    %206 = vmatprep.subr.mxu0 0.0
    %207 = vmatpush2.msra.mxu0 0.0
    %208 = vmatprep.subr.mxu0 0.0
    %209 = vmatpush2.msra.mxu0 0.0
    %210 = vmatprep.subr.mxu0 0.0
    %211 = vmatpush2.msra.mxu0 0.0
    %212 = vmatprep.subr.mxu0 0.0
    %213 = vmatpush2.msra.mxu0 0.0
    %214 = vmatprep.subr.mxu0 0.0
    %215 = vmatpush2.msra.mxu0 0.0
    %216 = vmatprep.subr.mxu0 0.0
    %217 = vmatpush2.msra.mxu0 0.0
    %218 = vmatprep.subr.mxu0 0.0
    %219 = vmatpush2.msra.mxu0 0.0
    %220 = vmatprep.subr.mxu0 0.0
    %221 = vmatpush2.msra.mxu0 0.0
    %222 = vmatprep.subr.mxu0 0.0
    %223 = vmatpush2.msra.mxu0 0.0
    %224 = vmatprep.subr.mxu0 0.0
    %225 = vmatpush2.msra.mxu0 0.0
    %226 = vmatprep.subr.mxu0 0.0
    %227 = vmatpush2.msra.mxu0 0.0
    %228 = vmatprep.subr.mxu0 0.0
    %229 = vmatpush2.msra.mxu0 0.0
    %230 = vmatprep.subr.mxu0 0.0
    %231 = vmatpush2.msra.mxu0 0.0
    %232 = vmatprep.mubr.f32.mxu0 0.0
    %233 = vmatmul.mubr.f32.gmra.mxu0 %v153
    %v234 = vpop.f32.mrf.mxu0
    %v235 = vadd.f32 0.0, %v234
    %v236 = vpop.f32.mrf.mxu0
    %237 = vmatprep.mubr.f32.mxu0 0.0
    %238 = vmatmul.mubr.f32.gmra.mxu0 %v156
    %v239 = vpop.f32.mrf.mxu0
    %v240 = vadd.f32 0.0, %v239
    %v241 = vpop.f32.mrf.mxu0
    %242 = vmatprep.mubr.f32.mxu0 0.0
    %243 = vmatmul.mubr.f32.gmra.mxu0 %v159
    %v244 = vpop.f32.mrf.mxu0
    %v245 = vadd.f32 0.0, %v244
    %v246 = vpop.f32.mrf.mxu0
    %247 = vmatprep.mubr.f32.mxu0 0.0
    %248 = vmatmul.mubr.f32.gmra.mxu0 %v162
    %v249 = vpop.f32.mrf.mxu0
    %v250 = vadd.f32 0.0, %v249
    %v251 = vpop.f32.mrf.mxu0
    %252 = vdwg.mxu0
    %v253 = vmax.f32 %v235, 0.0
    %v254 = vmax.f32 %v240, 0.0
    %v255 = vmax.f32 %v245, 0.0
    %v256 = vmax.f32 %v250, 0.0
    %vm257 = vcmask 171008
    %258 = vst.msk [vmem:[#allocation2] sm:$0xff] %vm257, %v253
    %259 = vst.msk [vmem:[#allocation2 + $0x8] sm:$0xff] %vm257, %v254
    %260 = vst.msk [vmem:[#allocation2 + $0x10] sm:$0xff] %vm257, %v255
    %261 = vst.msk [vmem:[#allocation2 + $0x18] sm:$0xff] %vm257, %v256
    %v262 = vld [vmem:[#allocation2] sm:$0x3]
    %vm263 = vcmask 164864
    %264 = vst.msk [vmem:[#allocation3] sm:$0x3] %vm263, %v262
    %v265 = vld [vmem:[#allocation2 + $0x2] sm:$0x3]
    %v268 = vunpack.c.l.s4 1983009808
    %v269 = vunpack.c.0.s8 %v268
    %v270 = vlaneseq
    %v271 = vshrl.u32 %v270, 7
    %v272 = vsub.s32 %v269, %v271
    %v273 = vrot.slane %v265, %v272
    %274 = vrot.lane.b32.xlu0 %v273, 21
    %v275 = vpop.permute.xlu0 %274
    %vm277 = vcmask 337064
    %278 = vst.msk [vmem:[#allocation3] sm:$0x3] %vm277, %v275
    %v279 = vld [vmem:[#allocation2 + $0x4] sm:$0x3]
    %v282 = vunpack.c.l.s4 1983009808
    %v283 = vunpack.c.0.s8 %v282
    %v284 = vlaneseq
    %v285 = vshrl.u32 %v284, 7
    %v286 = vsub.s32 %v283, %v285
    %v287 = vrot.slane %v279, %v286
    %288 = vrot.lane.b32.xlu0 %v287, 42
    %v289 = vpop.permute.xlu0 %288
    %vm291 = vcmask 509264
    %292 = vst.msk [vmem:[#allocation3] sm:$0x3] %vm291, %v289
    %v293 = vld [vmem:[#allocation2 + $0x6] sm:$0x3]
    %v296 = vunpack.c.l.s4 1983009808
    %v297 = vunpack.c.0.s8 %v296
    %v298 = vlaneseq
    %v299 = vshrl.u32 %v298, 7
    %v300 = vsub.s32 %v297, %v299
    %v301 = vrot.slane %v293, %v300
    %302 = vrot.lane.b32.xlu0 %v301, 63
    %v303 = vpop.permute.xlu0 %302
    %vm305 = vcmask 681464
    %306 = vst.msk [vmem:[#allocation3] sm:$0x3] %vm305, %v303
    %v307 = vld [vmem:[#allocation2 + $0x8] sm:$0x3]
    %v310 = vunpack.c.l.s4 1983009808
    %v311 = vunpack.c.0.s8 %v310
    %v312 = vlaneseq
    %v313 = vshrl.u32 %v312, 7
    %v314 = vsub.s32 %v311, %v313
    %v315 = vrot.slane %v307, %v314
    %316 = vrot.lane.b32.xlu0 %v315, 84
    %v317 = vpop.permute.xlu0 %316
    %vm319 = vcmask 853664
    %320 = vst.msk [vmem:[#allocation3] sm:$0x3] %vm319, %v317
    %v321 = vld [vmem:[#allocation2 + $0xa] sm:$0x3]
    %v324 = vunpack.c.l.s4 1983009808
    %v325 = vunpack.c.0.s8 %v324
    %v326 = vlaneseq
    %v327 = vshrl.u32 %v326, 7
    %v328 = vsub.s32 %v325, %v327
    %v329 = vrot.slane %v321, %v328
    %330 = vrot.lane.b32.xlu0 %v329, 105
    %v331 = vpop.permute.xlu0 %330
    %vm333 = vcmask 1025864
    %334 = vst.msk [vmem:[#allocation3] sm:$0x3] %vm333, %v331
    %v335 = vld [vmem:[#allocation2 + $0xc] sm:$0x3]
    %v338 = vunpack.c.l.s4 1983009808
    %v339 = vunpack.c.0.s8 %v338
    %v340 = vlaneseq
    %v341 = vshrl.u32 %v340, 7
    %v342 = vsub.s32 %v339, %v341
    %v343 = vrot.slane %v335, %v342
    %344 = vrot.lane.b32.xlu0 %v343, 126
    %v345 = vpop.permute.xlu0 %344
    %v346 = vrot.slane %v345, 6
    %vm347 = vcmask 1031168
    %v348 = vsel %vm347, %v346, %v345
    %vm350 = vcmask 1042416
    %vm351 = vcmask 150530
    %vm352 = vmor %vm351, %vm350
    %353 = vst.msk [vmem:[#allocation3] sm:$0xf] %vm352, %v348
    %v354 = vld [vmem:[#allocation2 + $0xe] sm:$0x3]
    %v357 = vunpack.c.l.s4 1983009808
    %v358 = vunpack.c.0.s8 %v357
    %v359 = vlaneseq
    %v360 = vshrl.u32 %v359, 7
    %v361 = vsub.s32 %v358, %v360
    %v362 = vrot.slane %v354, %v361
    %363 = vrot.lane.b32.xlu0 %v362, 19
    %v364 = vpop.permute.xlu0 %363
    %vm366 = vcmask 320664
    %367 = vst.msk [vmem:[#allocation3 + $0x2] sm:$0x3] %vm366, %v364
    %v368 = vld [vmem:[#allocation2 + $0x10] sm:$0x3]
    %v371 = vunpack.c.l.s4 1983009808
    %v372 = vunpack.c.0.s8 %v371
    %v373 = vlaneseq
    %v374 = vshrl.u32 %v373, 7
    %v375 = vsub.s32 %v372, %v374
    %v376 = vrot.slane %v368, %v375
    %377 = vrot.lane.b32.xlu0 %v376, 40
    %v378 = vpop.permute.xlu0 %377
    %vm380 = vcmask 492864
    %381 = vst.msk [vmem:[#allocation3 + $0x2] sm:$0x3] %vm380, %v378
    %v382 = vld [vmem:[#allocation2 + $0x12] sm:$0x3]
    %v385 = vunpack.c.l.s4 1983009808
    %v386 = vunpack.c.0.s8 %v385
    %v387 = vlaneseq
    %v388 = vshrl.u32 %v387, 7
    %v389 = vsub.s32 %v386, %v388
    %v390 = vrot.slane %v382, %v389
    %391 = vrot.lane.b32.xlu0 %v390, 61
    %v392 = vpop.permute.xlu0 %391
    %vm394 = vcmask 665064
    %395 = vst.msk [vmem:[#allocation3 + $0x2] sm:$0x3] %vm394, %v392
    %v396 = vld [vmem:[#allocation2 + $0x14] sm:$0x3]
    %v399 = vunpack.c.l.s4 1983009808
    %v400 = vunpack.c.0.s8 %v399
    %v401 = vlaneseq
    %v402 = vshrl.u32 %v401, 7
    %v403 = vsub.s32 %v400, %v402
    %v404 = vrot.slane %v396, %v403
    %405 = vrot.lane.b32.xlu0 %v404, 82
    %v406 = vpop.permute.xlu0 %405
    %vm408 = vcmask 837264
    %409 = vst.msk [vmem:[#allocation3 + $0x2] sm:$0x3] %vm408, %v406
    %v410 = vld [vmem:[#allocation2 + $0x16] sm:$0x3]
    %v413 = vunpack.c.l.s4 1983009808
    %v414 = vunpack.c.0.s8 %v413
    %v415 = vlaneseq
    %v416 = vshrl.u32 %v415, 7
    %v417 = vsub.s32 %v414, %v416
    %v418 = vrot.slane %v410, %v417
    %419 = vrot.lane.b32.xlu0 %v418, 103
    %v420 = vpop.permute.xlu0 %419
    %vm422 = vcmask 1009464
    %423 = vst.msk [vmem:[#allocation3 + $0x2] sm:$0x3] %vm422, %v420
    %v424 = vld [vmem:[#allocation2 + $0x18] sm:$0x3]
    %v427 = vunpack.c.l.s4 1983009808
    %v428 = vunpack.c.0.s8 %v427
    %v429 = vlaneseq
    %v430 = vshrl.u32 %v429, 7
    %v431 = vsub.s32 %v428, %v430
    %v432 = vrot.slane %v424, %v431
    %433 = vrot.lane.b32.xlu0 %v432, 124
    %v434 = vpop.permute.xlu0 %433
    %v435 = vrot.slane %v434, 6
    %vm436 = vcmask 1014784
    %v437 = vsel %vm436, %v435, %v434
    %vm439 = vcmask 1042400
    %vm440 = vcmask 134146
    %vm441 = vmor %vm440, %vm439
    %442 = vst.msk [vmem:[#allocation3 + $0x2] sm:$0xf] %vm441, %v437
    %v443 = vld [vmem:[#allocation2 + $0x1a] sm:$0x3]
    %v446 = vunpack.c.l.s4 1983009808
    %v447 = vunpack.c.0.s8 %v446
    %v448 = vlaneseq
    %v449 = vshrl.u32 %v448, 7
    %v450 = vsub.s32 %v447, %v449
    %v451 = vrot.slane %v443, %v450
    %452 = vrot.lane.b32.xlu0 %v451, 17
    %v453 = vpop.permute.xlu0 %452
    %vm455 = vcmask 304264
    %456 = vst.msk [vmem:[#allocation3 + $0x4] sm:$0x3] %vm455, %v453
    %v457 = vld [vmem:[#allocation2 + $0x1c] sm:$0x3]
    %v460 = vunpack.c.l.s4 1983009808
    %v461 = vunpack.c.0.s8 %v460
    %v462 = vlaneseq
    %v463 = vshrl.u32 %v462, 7
    %v464 = vsub.s32 %v461, %v463
    %v465 = vrot.slane %v457, %v464
    %466 = vrot.lane.b32.xlu0 %v465, 38
    %v467 = vpop.permute.xlu0 %466
    %vm469 = vcmask 476464
    %470 = vst.msk [vmem:[#allocation3 + $0x4] sm:$0x3] %vm469, %v467
    %v471 = vld [vmem:[#allocation2 + $0x1e] sm:$0x3]
    %v474 = vunpack.c.l.s4 1983009808
    %v475 = vunpack.c.0.s8 %v474
    %v476 = vlaneseq
    %v477 = vshrl.u32 %v476, 7
    %v478 = vsub.s32 %v475, %v477
    %v479 = vrot.slane %v471, %v478
    %480 = vrot.lane.b32.xlu0 %v479, 59
    %v481 = vpop.permute.xlu0 %480
    %vm483 = vcmask 648664
    %484 = vst.msk [vmem:[#allocation3 + $0x4] sm:$0x3] %vm483, %v481
    %v485 = vld [vmem:[#allocation3] sm:$0x3f]
    %v486 = vld [vmem:[%s3] sm:$0xff]
    %v487 = vld [vmem:[%s3 + $0x8] sm:$0xff]
    %v488 = vld [vmem:[%s3 + $0x10] sm:$0xff]
    %v489 = vld [vmem:[%s3 + $0x18] sm:$0xff]
    %v490 = vld [vmem:[%s3 + $0x20] sm:$0xff]
    %v491 = vld [vmem:[%s3 + $0x28] sm:$0xff]
    %v492 = vld [vmem:[%s3 + $0x30] sm:$0xff]
    %v493 = vld [vmem:[%s3 + $0x38] sm:$0xff]
    %v494 = vld [vmem:[%s3 + $0x40] sm:$0xff]
    %v495 = vld [vmem:[%s3 + $0x48] sm:$0xff]
    %v496 = vld [vmem:[%s3 + $0x50] sm:$0xff]
    %v497 = vld [vmem:[%s3 + $0x58] sm:$0xff]
    %v498 = vld [vmem:[%s3 + $0x60] sm:$0xff]
    %v499 = vld [vmem:[%s3 + $0x68] sm:$0xff]
    %v500 = vld [vmem:[%s3 + $0x70] sm:$0xff]
    %v501 = vld [vmem:[%s3 + $0x78] sm:$0xff]
    %v502 = vld [vmem:[%s3 + $0x80] sm:$0xff]
    %v503 = vld [vmem:[%s3 + $0x88] sm:$0xff]
    %v504 = vld [vmem:[%s3 + $0x90] sm:$0xff]
    %v505 = vld [vmem:[%s3 + $0x98] sm:$0xff]
    %v506 = vld [vmem:[%s3 + $0xa0] sm:$0xff]
    %v507 = vld [vmem:[%s3 + $0xa8] sm:$0xff]
    %v508 = vld [vmem:[%s3 + $0xb0] sm:$0xff]
    %v509 = vld [vmem:[%s3 + $0xb8] sm:$0xff]
    %v510 = vld [vmem:[%s3 + $0xc0] sm:$0xff]
    %v511 = vld [vmem:[%s3 + $0xc8] sm:$0xff]
    %v512 = vld [vmem:[%s3 + $0xd0] sm:$0xff]
    %v513 = vld [vmem:[%s3 + $0xd8] sm:$0xff]
    %v514 = vld [vmem:[%s3 + $0xe0] sm:$0xff]
    %v515 = vld [vmem:[%s3 + $0xe8] sm:$0xff]
    %v516 = vld [vmem:[%s3 + $0xf0] sm:$0xff]
    %v517 = vld [vmem:[%s3 + $0xf8] sm:$0xff]
    %v518 = vld [vmem:[%s3 + $0x100] sm:$0xff]
    %v519 = vld [vmem:[%s3 + $0x108] sm:$0xff]
    %v520 = vld [vmem:[%s3 + $0x110] sm:$0xff]
    %v521 = vld [vmem:[%s3 + $0x118] sm:$0xff]
    %v522 = vld [vmem:[%s3 + $0x120] sm:$0xff]
    %v523 = vld [vmem:[%s3 + $0x128] sm:$0xff]
    %v524 = vld [vmem:[%s3 + $0x130] sm:$0xff]
    %v525 = vld [vmem:[%s3 + $0x138] sm:$0xff]
    %v526 = vld [vmem:[%s3 + $0x140] sm:$0xff]
    %v527 = vld [vmem:[%s3 + $0x148] sm:$0xff]
    %v529 = vcombine.high %v485, %v485
    %v531 = vunpack.c.l.s4 1983009808
    %v532 = vunpack.c.0.s8 %v531
    %v533 = vlaneseq
    %v534 = vshrl.u32 %v533, 7
    %v535 = vsub.s32 %v532, %v534
    %v536 = vrot.slane %v485, %v535
    %v538 = vunpack.c.l.s4 1983009808
    %v539 = vunpack.c.0.s8 %v538
    %v540 = vlaneseq
    %v541 = vshrl.u32 %v540, 7
    %v542 = vsub.s32 %v539, %v541
    %v543 = vrot.slane %v529, %v542
    %v544 = vcombine.high %v536, %v536
    %vm547 = vcmask 654336
    %v548 = vsel %vm547, %v543, 0
    %550 = vmatprep.subr.mxu0 0.0
    %551 = vmatpush1.msra.mxu0 %v501
    %552 = vmatprep.subr.mxu0 0.0
    %553 = vmatpush1.msra.mxu0 %v500
    %554 = vmatprep.subr.mxu0 0.0
    %555 = vmatpush1.msra.mxu0 %v499
    %556 = vmatprep.subr.mxu0 0.0
    %557 = vmatpush1.msra.mxu0 %v498
    %558 = vmatprep.subr.mxu0 0.0
    %559 = vmatpush1.msra.mxu0 %v497
    %560 = vmatprep.subr.mxu0 0.0
    %561 = vmatpush1.msra.mxu0 %v496
    %562 = vmatprep.subr.mxu0 0.0
    %563 = vmatpush1.msra.mxu0 %v495
    %564 = vmatprep.subr.mxu0 0.0
    %565 = vmatpush1.msra.mxu0 %v494
    %566 = vmatprep.subr.mxu0 0.0
    %567 = vmatpush1.msra.mxu0 %v493
    %568 = vmatprep.subr.mxu0 0.0
    %569 = vmatpush1.msra.mxu0 %v492
    %570 = vmatprep.subr.mxu0 0.0
    %571 = vmatpush1.msra.mxu0 %v491
    %572 = vmatprep.subr.mxu0 0.0
    %573 = vmatpush1.msra.mxu0 %v490
    %574 = vmatprep.subr.mxu0 0.0
    %575 = vmatpush1.msra.mxu0 %v489
    %576 = vmatprep.subr.mxu0 0.0
    %577 = vmatpush1.msra.mxu0 %v488
    %578 = vmatprep.subr.mxu0 0.0
    %579 = vmatpush1.msra.mxu0 %v487
    %580 = vmatprep.subr.mxu0 0.0
    %581 = vmatpush1.msra.mxu0 %v486
    %582 = vmatprep.subr.mxu0 0.0
    %583 = vmatpush2.msra.mxu0 %v517
    %584 = vmatprep.subr.mxu0 0.0
    %585 = vmatpush2.msra.mxu0 %v516
    %586 = vmatprep.subr.mxu0 0.0
    %587 = vmatpush2.msra.mxu0 %v515
    %588 = vmatprep.subr.mxu0 0.0
    %589 = vmatpush2.msra.mxu0 %v514
    %590 = vmatprep.subr.mxu0 0.0
    %591 = vmatpush2.msra.mxu0 %v513
    %592 = vmatprep.subr.mxu0 0.0
    %593 = vmatpush2.msra.mxu0 %v512
    %594 = vmatprep.subr.mxu0 0.0
    %595 = vmatpush2.msra.mxu0 %v511
    %596 = vmatprep.subr.mxu0 0.0
    %597 = vmatpush2.msra.mxu0 %v510
    %598 = vmatprep.subr.mxu0 0.0
    %599 = vmatpush2.msra.mxu0 %v509
    %600 = vmatprep.subr.mxu0 0.0
    %601 = vmatpush2.msra.mxu0 %v508
    %602 = vmatprep.subr.mxu0 0.0
    %603 = vmatpush2.msra.mxu0 %v507
    %604 = vmatprep.subr.mxu0 0.0
    %605 = vmatpush2.msra.mxu0 %v506
    %606 = vmatprep.subr.mxu0 0.0
    %607 = vmatpush2.msra.mxu0 %v505
    %608 = vmatprep.subr.mxu0 0.0
    %609 = vmatpush2.msra.mxu0 %v504
    %610 = vmatprep.subr.mxu0 0.0
    %611 = vmatpush2.msra.mxu0 %v503
    %612 = vmatprep.subr.mxu0 0.0
    %613 = vmatpush2.msra.mxu0 %v502
    %614 = vmatprep.mubr.f32.mxu0 %v544
    %615 = vmatmul.mubr.f32.gmra.mxu0 %v536
    %v616 = vpop.f32.mrf.mxu0
    %v617 = vadd.f32 0.0, %v616
    %v618 = vpop.f32.mrf.mxu0
    %619 = vdwg.mxu0
    %620 = vmatprep.subr.mxu0 0.0
    %621 = vmatpush1.msra.mxu0 0.0
    %622 = vmatprep.subr.mxu0 0.0
    %623 = vmatpush1.msra.mxu0 0.0
    %624 = vmatprep.subr.mxu0 0.0
    %625 = vmatpush1.msra.mxu0 0.0
    %626 = vmatprep.subr.mxu0 0.0
    %627 = vmatpush1.msra.mxu0 0.0
    %628 = vmatprep.subr.mxu0 0.0
    %629 = vmatpush1.msra.mxu0 0.0
    %630 = vmatprep.subr.mxu0 0.0
    %631 = vmatpush1.msra.mxu0 0.0
    %632 = vmatprep.subr.mxu0 0.0
    %633 = vmatpush1.msra.mxu0 %v527
    %634 = vmatprep.subr.mxu0 0.0
    %635 = vmatpush1.msra.mxu0 %v526
    %636 = vmatprep.subr.mxu0 0.0
    %637 = vmatpush1.msra.mxu0 %v525
    %638 = vmatprep.subr.mxu0 0.0
    %639 = vmatpush1.msra.mxu0 %v524
    %640 = vmatprep.subr.mxu0 0.0
    %641 = vmatpush1.msra.mxu0 %v523
    %642 = vmatprep.subr.mxu0 0.0
    %643 = vmatpush1.msra.mxu0 %v522
    %644 = vmatprep.subr.mxu0 0.0
    %645 = vmatpush1.msra.mxu0 %v521
    %646 = vmatprep.subr.mxu0 0.0
    %647 = vmatpush1.msra.mxu0 %v520
    %648 = vmatprep.subr.mxu0 0.0
    %649 = vmatpush1.msra.mxu0 %v519
    %650 = vmatprep.subr.mxu0 0.0
    %651 = vmatpush1.msra.mxu0 %v518
    %652 = vmatprep.subr.mxu0 0.0
    %653 = vmatpush2.msra.mxu0 0.0
    %654 = vmatprep.subr.mxu0 0.0
    %655 = vmatpush2.msra.mxu0 0.0
    %656 = vmatprep.subr.mxu0 0.0
    %657 = vmatpush2.msra.mxu0 0.0
    %658 = vmatprep.subr.mxu0 0.0
    %659 = vmatpush2.msra.mxu0 0.0
    %660 = vmatprep.subr.mxu0 0.0
    %661 = vmatpush2.msra.mxu0 0.0
    %662 = vmatprep.subr.mxu0 0.0
    %663 = vmatpush2.msra.mxu0 0.0
    %664 = vmatprep.subr.mxu0 0.0
    %665 = vmatpush2.msra.mxu0 0.0
    %666 = vmatprep.subr.mxu0 0.0
    %667 = vmatpush2.msra.mxu0 0.0
    %668 = vmatprep.subr.mxu0 0.0
    %669 = vmatpush2.msra.mxu0 0.0
    %670 = vmatprep.subr.mxu0 0.0
    %671 = vmatpush2.msra.mxu0 0.0
    %672 = vmatprep.subr.mxu0 0.0
    %673 = vmatpush2.msra.mxu0 0.0
    %674 = vmatprep.subr.mxu0 0.0
    %675 = vmatpush2.msra.mxu0 0.0
    %676 = vmatprep.subr.mxu0 0.0
    %677 = vmatpush2.msra.mxu0 0.0
    %678 = vmatprep.subr.mxu0 0.0
    %679 = vmatpush2.msra.mxu0 0.0
    %680 = vmatprep.subr.mxu0 0.0
    %681 = vmatpush2.msra.mxu0 0.0
    %682 = vmatprep.subr.mxu0 0.0
    %683 = vmatpush2.msra.mxu0 0.0
    %684 = vmatprep.mubr.f32.mxu0 0.0
    %685 = vmatmul.mubr.f32.gmra.mxu0 %v548
    %v686 = vpop.f32.mrf.mxu0
    %v687 = vadd.f32 %v617, %v686
    %v688 = vpop.f32.mrf.mxu0
    %689 = vdwg.mxu0
    %v690 = vmax.f32 %v687, 0.0
    %691 = vst [vmem:[#allocation4] sm:$0x3] %v690
    // Predicated region
    $region18: #{cnn_forward.1} parent=1 // pred_check
      _
    $region19: #{cnn_forward.1} parent=1 // pred_check_branch
      %693 = sbr.rel (0) target = $region21
    $region20: #{cnn_forward.1} parent=1 // pred_region
      %s695 = ssub.s32 32, 32
      %696 = vsyncadd [#allocation5], %s695
      %s698 = sshll.u32 [#allocation4], 4
      %s699 = int_to_ptr.vmem [resolvable:$true] %s698
      %701 = dma.vmem_to_hbm [thread:$0]  %s699, 32, %s4, [#allocation5]
    $region21: #{cnn_forward.1} parent=1 // pred_fallthru
      _
    // Predicated region
    $region22: #{cnn_forward.1} parent=1 // pred_check
      _
    $region23: #{cnn_forward.1} parent=1 // pred_check_branch
      %703 = sbr.rel (0) target = $region25
    $region24: #{cnn_forward.1} parent=1 // pred_region
      %704 = dma.done [#allocation5], 32
    $region25: #{cnn_forward.1} parent=1 // pred_fallthru
      _
    %705 = vsyncpa [#allocation5], 1

</llo_original>
